<compile_context>
chip_gen: v5e
topology: v5e:2x2
jax: 0.10.0
libtpu: 0.0.40
codegen_flags: <defaults>
</compile_context>

<pallas_src>
import functools

import jax
import jax.numpy as jnp
from jax.experimental import pallas as pl
from jax.experimental.pallas import tpu as pltpu


# ----------------------------- Pallas kernel ------------------------------ #
def _make_conv1d_kernel(*, K, stride, dilation, TL, q_max, single_l_tile,
                        has_bias):
    """Builds the kernel body for fixed static conv parameters."""
    TLW = TL + q_max  # window width loaded per tap (covers all k-shifts)

    def compute(x_ref, w_ref, b_ref, o_ref):
        # x_ref: (stride, Cg_in, M_p)  -- resident per (g, n)
        # w_ref: (K, Cg_out, Cg_in)    -- resident per g
        # b_ref: (Cg_out, 1)           -- resident per g (only if has_bias)
        # o_ref: (Cg_out, TL)          -- lane-dense output tile
        if single_l_tile:
            base = 0  # fully static slices
        else:
            base = pl.multiple_of(pl.program_id(2) * TL, TL)

        acc = jnp.zeros(o_ref.shape, jnp.float32)
        wins = {}  # one VMEM window load per distinct phase r
        for k in range(K):
            q, r = divmod(k * dilation, stride)
            if r not in wins:
                wins[r] = x_ref[r, :, pl.ds(base, TLW)]      # (Cg_in, TL+q_max)
            x_k = wins[r][:, q:q + TL]                       # static lane slice
            acc = acc + jnp.dot(w_ref[k], x_k,
                                preferred_element_type=jnp.float32)
        if has_bias:
            acc = acc + b_ref[...]
        o_ref[...] = acc.astype(o_ref.dtype)

    if has_bias:
        def kernel(x_ref, w_ref, b_ref, o_ref):
            compute(x_ref, w_ref, b_ref, o_ref)
    else:
        def kernel(x_ref, w_ref, o_ref):
            compute(x_ref, w_ref, None, o_ref)
    return kernel


def _conv1d_pallas(x_r, w_r, b_r, *, K, stride, dilation, TL, n_l, q_max,
                   has_bias, out_dtype):
    N, G, stride_dim, Cg_in, M_p = x_r.shape
    Cg_out = w_r.shape[2]
    L_out_p = n_l * TL

    kernel = _make_conv1d_kernel(K=K, stride=stride, dilation=dilation, TL=TL,
                                 q_max=q_max, single_l_tile=(n_l == 1),
                                 has_bias=has_bias)

    # x stays resident across the l (and co) iterations for a fixed (g, n).
    x_spec = pl.BlockSpec(
        (pl.Squeezed(), pl.Squeezed(), stride_dim, Cg_in, M_p),
        lambda g, n, l: (n, g, 0, 0, 0))
    # weights resident across (n, l) for a fixed group.
    w_spec = pl.BlockSpec(
        (pl.Squeezed(), K, Cg_out, Cg_in),
        lambda g, n, l: (g, 0, 0, 0))
    o_spec = pl.BlockSpec(
        (pl.Squeezed(), pl.Squeezed(), Cg_out, TL),
        lambda g, n, l: (n, g, 0, l))

    in_specs = [x_spec, w_spec]
    args = [x_r, w_r]
    if has_bias:
        in_specs.append(
            pl.BlockSpec((pl.Squeezed(), Cg_out, 1), lambda g, n, l: (g, 0, 0)))
        args.append(b_r)

    flops = 2 * N * G * K * Cg_out * Cg_in * L_out_p
    bytes_accessed = 4 * (x_r.size + w_r.size
                          + (b_r.size if has_bias else 0)
                          + N * G * Cg_out * L_out_p)

    return pl.pallas_call(
        kernel,
        out_shape=jax.ShapeDtypeStruct((N, G, Cg_out, L_out_p), out_dtype),
        grid=(G, N, n_l),
        in_specs=in_specs,
        out_specs=o_spec,
        compiler_params=pltpu.CompilerParams(
            dimension_semantics=("parallel", "parallel", "parallel"),
            vmem_limit_bytes=48 * 1024 * 1024),
        cost_estimate=pl.CostEstimate(flops=flops, transcendentals=0,
                                      bytes_accessed=bytes_accessed),
    )(*args)


# ------------------------------- glue (JAX) -------------------------------- #
@functools.partial(
    jax.jit,
    static_argnames=("kernel_size", "stride", "padding", "dilation", "groups"))
def conv1d_forward(x, weight, bias, *, kernel_size, stride, padding, dilation,
                   groups):
    """x: (N, C_in, L); weight: (C_out, C_in//groups, K); bias: (C_out,)|None."""
    has_bias = bias is not None
    N, C_in, L = x.shape
    C_out = weight.shape[0]
    K, G = kernel_size, groups
    Cg_in, Cg_out = C_in // G, C_out // G

    L_pad = L + 2 * padding
    L_out = (L_pad - dilation * (K - 1) - 1) // stride + 1
    assert L_out >= 1, "conv1d output length must be >= 1"

    # L_out tiling (lane-dense output tiles; full length when it fits).
    MAX_TL = 1024
    if L_out <= MAX_TL:
        TL, n_l = L_out, 1
    else:
        TL = MAX_TL
        n_l = pl.cdiv(L_out, TL)
    L_out_p = n_l * TL

    # Stride-regrouped input: x_r[n, g, r, c, m] = x_pad[n, g*Cg_in+c, m*stride+r]
    q_max = (dilation * (K - 1)) // stride
    M_p = L_out_p + q_max
    total = M_p * stride

    x_pad = jnp.pad(x, ((0, 0), (0, 0), (padding, padding)))
    if total > L_pad:
        x_pad = jnp.pad(x_pad, ((0, 0), (0, 0), (0, total - L_pad)))
    elif total < L_pad:
        x_pad = x_pad[:, :, :total]

    x_r = x_pad.reshape(N, G, Cg_in, M_p, stride).transpose(0, 1, 4, 2, 3)
    w_r = weight.reshape(G, Cg_out, Cg_in, K).transpose(0, 3, 1, 2)
    b_r = bias.reshape(G, Cg_out, 1) if has_bias else None

    out = _conv1d_pallas(x_r, w_r, b_r, K=K, stride=stride, dilation=dilation,
                         TL=TL, n_l=n_l, q_max=q_max, has_bias=has_bias,
                         out_dtype=x.dtype)
    # (N, G, Cg_out, L_out_p) -> (N, C_out, L_out): slice + reshape only.
    return out[..., :L_out].reshape(N, C_out, L_out)


class Conv1d:
    """Mirrors torch.conv1d(x, weight, bias, stride, padding, dilation, groups)."""

    def __init__(self, in_channels, out_channels, kernel_size, stride=1,
                 padding=0, dilation=1, groups=1, bias=True,
                 padding_mode="zeros", *, key):
        assert padding_mode == "zeros", "only zero padding supported"
        assert in_channels % groups == 0 and out_channels % groups == 0
        self.in_channels = in_channels
        self.out_channels = out_channels
        self.kernel_size = kernel_size
        self.stride = stride
        self.padding = padding
        self.dilation = dilation
        self.groups = groups
        kw, kb = jax.random.split(key)
        # deterministic "randn"-style init (valid 3-D conv1d weight; see TODO).
        self.weight = jax.random.normal(
            kw, (out_channels, in_channels // groups, kernel_size), jnp.float32)
        self.has_bias = bool(bias)
        self.bias = (jax.random.normal(kb, (out_channels,), jnp.float32)
                     if bias else jnp.zeros((out_channels,), jnp.float32))

    def forward(self, x):
        return conv1d_forward(
            x, self.weight, self.bias if self.has_bias else None,
            kernel_size=self.kernel_size, stride=self.stride,
            padding=self.padding, dilation=self.dilation, groups=self.groups)

    __call__ = forward


def _conv1d_reference(x, weight, bias, stride, padding, dilation, groups):
    out = jax.lax.conv_general_dilated(
        x, weight,
        window_strides=(stride,), padding=[(padding, padding)],
        rhs_dilation=(dilation,), feature_group_count=groups,
        dimension_numbers=("NCH", "OIH", "NCH"))
    return out + bias[None, :, None]


# --------------------------------- demo ----------------------------------- #
if __name__ == "__main__":
    key = jax.random.PRNGKey(0)
    k_x1, k_m1, k_x2, k_m2 = jax.random.split(key, 4)

    # Config 1: plain conv (stride=1, padding=1, dilation=1, groups=1, bias).
    N, C_in, L = 2, 4, 16
    C_out, K = 8, 3
    x1 = jax.random.normal(k_x1, (N, C_in, L), jnp.float32)
    conv1 = Conv1d(C_in, C_out, K, stride=1, padding=1, dilation=1, groups=1,
                   bias=True, key=k_m1)
    out1 = jax.block_until_ready(conv1(x1))
    ref1 = _conv1d_reference(x1, conv1.weight, conv1.bias, 1, 1, 1, 1)
    assert out1.shape == ref1.shape, (out1.shape, ref1.shape)
    assert jnp.allclose(out1, ref1, atol=1e-4, rtol=1e-4), \
        float(jnp.abs(out1 - ref1).max())

    # Config 2: strided / dilated / grouped / no bias.
    x2 = jax.random.normal(k_x2, (2, 4, 16), jnp.float32)
    conv2 = Conv1d(4, 8, 3, stride=2, padding=2, dilation=2, groups=2,
                   bias=False, key=k_m2)
    out2 = jax.block_until_ready(conv2(x2))
    ref2 = _conv1d_reference(x2, conv2.weight, conv2.bias, 2, 2, 2, 2)
    assert out2.shape == ref2.shape, (out2.shape, ref2.shape)
    assert jnp.allclose(out2, ref2, atol=1e-4, rtol=1e-4), \
        float(jnp.abs(out2 - ref2).max())

    print("KERNEL_OK")
</pallas_src>

<mosaic_0001>
module attributes {stable_mosaic.version = 11 : i64} {
  func.func @kernel(%arg0: i32, %arg1: i32, %arg2: i32, %arg3: memref<1x1x1x4x18xf32, #tpu.memory_space<vmem>>, %arg4: memref<1x3x8x4xf32, #tpu.memory_space<vmem>>, %arg5: memref<1x8x1xf32, #tpu.memory_space<vmem>>, %arg6: memref<1x1x8x16xf32, #tpu.memory_space<vmem>>) attributes {dimension_semantics = [#tpu.dimension_semantics<parallel>, #tpu.dimension_semantics<parallel>, #tpu.dimension_semantics<parallel>], iteration_bounds = array<i64: 1, 2, 1>, scalar_prefetch = 0 : i64, scratch_operands = 0 : i64, tpu.core_type = #tpu.core_type<tc>, window_params = [{transform_indices = @transform_0, window_bounds = array<i64: 1, 1, 1, 4, 18>}, {transform_indices = @transform_1, window_bounds = array<i64: 1, 3, 8, 4>}, {transform_indices = @transform_2, window_bounds = array<i64: 1, 8, 1>}, {transform_indices = @transform_3, window_bounds = array<i64: 1, 1, 8, 16>}]} {
    %cst = arith.constant 0.000000e+00 : f32
    %0 = vector.broadcast %cst : f32 to vector<8x16xf32>
    %c0 = arith.constant 0 : index
    %c0_0 = arith.constant 0 : index
    %c0_1 = arith.constant 0 : index
    %c0_2 = arith.constant 0 : index
    %c0_3 = arith.constant 0 : index
    %1 = vector.load %arg3[%c0, %c0_0, %c0_1, %c0_2, %c0_3] : memref<1x1x1x4x18xf32, #tpu.memory_space<vmem>>, vector<1x1x1x4x18xf32>
    %2 = vector.shape_cast %1 : vector<1x1x1x4x18xf32> to vector<4x18xf32>
    %3 = vector.extract_strided_slice %2 {offsets = [0, 0], sizes = [4, 16], strides = [1, 1]} : vector<4x18xf32> to vector<4x16xf32>
    %c0_4 = arith.constant 0 : index
    %c0_5 = arith.constant 0 : index
    %c0_6 = arith.constant 0 : index
    %c0_7 = arith.constant 0 : index
    %4 = vector.load %arg4[%c0_4, %c0_5, %c0_6, %c0_7] : memref<1x3x8x4xf32, #tpu.memory_space<vmem>>, vector<1x1x8x4xf32>
    %5 = vector.shape_cast %4 : vector<1x1x8x4xf32> to vector<8x4xf32>
    %cst_8 = arith.constant dense<0.000000e+00> : vector<8x16xf32>
    %6 = tpu.matmul %5, %3, %cst_8 {dimension_numbers = #tpu.dot_dimension_numbers<[1], [0], [0], [1], [0, 0, 1, 1], [], []>} : vector<8x4xf32>, vector<4x16xf32>, vector<8x16xf32> -> vector<8x16xf32>
    %7 = arith.addf %0, %6 : vector<8x16xf32>
    %8 = vector.extract_strided_slice %2 {offsets = [0, 1], sizes = [4, 16], strides = [1, 1]} : vector<4x18xf32> to vector<4x16xf32>
    %c0_9 = arith.constant 0 : index
    %c1 = arith.constant 1 : index
    %c0_10 = arith.constant 0 : index
    %c0_11 = arith.constant 0 : index
    %9 = vector.load %arg4[%c0_9, %c1, %c0_10, %c0_11] : memref<1x3x8x4xf32, #tpu.memory_space<vmem>>, vector<1x1x8x4xf32>
    %10 = vector.shape_cast %9 : vector<1x1x8x4xf32> to vector<8x4xf32>
    %cst_12 = arith.constant dense<0.000000e+00> : vector<8x16xf32>
    %11 = tpu.matmul %10, %8, %cst_12 {dimension_numbers = #tpu.dot_dimension_numbers<[1], [0], [0], [1], [0, 0, 1, 1], [], []>} : vector<8x4xf32>, vector<4x16xf32>, vector<8x16xf32> -> vector<8x16xf32>
    %12 = arith.addf %7, %11 : vector<8x16xf32>
    %13 = vector.extract_strided_slice %2 {offsets = [0, 2], sizes = [4, 16], strides = [1, 1]} : vector<4x18xf32> to vector<4x16xf32>
    %c0_13 = arith.constant 0 : index
    %c2 = arith.constant 2 : index
    %c0_14 = arith.constant 0 : index
    %c0_15 = arith.constant 0 : index
    %14 = vector.load %arg4[%c0_13, %c2, %c0_14, %c0_15] : memref<1x3x8x4xf32, #tpu.memory_space<vmem>>, vector<1x1x8x4xf32>
    %15 = vector.shape_cast %14 : vector<1x1x8x4xf32> to vector<8x4xf32>
    %cst_16 = arith.constant dense<0.000000e+00> : vector<8x16xf32>
    %16 = tpu.matmul %15, %13, %cst_16 {dimension_numbers = #tpu.dot_dimension_numbers<[1], [0], [0], [1], [0, 0, 1, 1], [], []>} : vector<8x4xf32>, vector<4x16xf32>, vector<8x16xf32> -> vector<8x16xf32>
    %17 = arith.addf %12, %16 : vector<8x16xf32>
    %c0_17 = arith.constant 0 : index
    %c0_18 = arith.constant 0 : index
    %c0_19 = arith.constant 0 : index
    %18 = vector.load %arg5[%c0_17, %c0_18, %c0_19] : memref<1x8x1xf32, #tpu.memory_space<vmem>>, vector<1x8x1xf32>
    %19 = vector.shape_cast %18 : vector<1x8x1xf32> to vector<8x1xf32>
    %20 = vector.broadcast %19 : vector<8x1xf32> to vector<8x16xf32>
    %21 = arith.addf %17, %20 : vector<8x16xf32>
    %c0_20 = arith.constant 0 : index
    %c0_21 = arith.constant 0 : index
    %c0_22 = arith.constant 0 : index
    %c0_23 = arith.constant 0 : index
    %22 = vector.load %arg6[%c0_20, %c0_21, %c0_22, %c0_23] : memref<1x1x8x16xf32, #tpu.memory_space<vmem>>, vector<1x1x8x16xf32>
    %23 = vector.shape_cast %22 : vector<1x1x8x16xf32> to vector<8x16xf32>
    %24 = vector.shape_cast %21 : vector<8x16xf32> to vector<1x1x8x16xf32>
    tpu.vector_store %arg6[%c0_20, %c0_21, %c0_22, %c0_23], %24 {strides = array<i32>} : memref<1x1x8x16xf32, #tpu.memory_space<vmem>>, vector<1x1x8x16xf32>,
    return
  }
  func.func @transform_0(%arg0: i32, %arg1: i32, %arg2: i32) -> (i32, i32, i32, i32, i32) {
    %c0_i32 = arith.constant 0 : i32
    %c0_i32_0 = arith.constant 0 : i32
    %c0_i32_1 = arith.constant 0 : i32
    %c0_i32_2 = arith.constant 0 : i32
    return %arg1, %arg0, %c0_i32, %c0_i32_0, %c0_i32_1 : i32, i32, i32, i32, i32
  }
  func.func @transform_1(%arg0: i32, %arg1: i32, %arg2: i32) -> (i32, i32, i32, i32) {
    %c0_i32 = arith.constant 0 : i32
    %c0_i32_0 = arith.constant 0 : i32
    %c0_i32_1 = arith.constant 0 : i32
    %c0_i32_2 = arith.constant 0 : i32
    return %arg0, %c0_i32, %c0_i32_0, %c0_i32_1 : i32, i32, i32, i32
  }
  func.func @transform_2(%arg0: i32, %arg1: i32, %arg2: i32) -> (i32, i32, i32) {
    %c0_i32 = arith.constant 0 : i32
    %c0_i32_0 = arith.constant 0 : i32
    %c0_i32_1 = arith.constant 0 : i32
    return %arg0, %c0_i32, %c0_i32_0 : i32, i32, i32
  }
  func.func @transform_3(%arg0: i32, %arg1: i32, %arg2: i32) -> (i32, i32, i32, i32) {
    %c0_i32 = arith.constant 0 : i32
    %c0_i32_0 = arith.constant 0 : i32
    return %arg1, %arg0, %c0_i32, %arg2 : i32, i32, i32, i32
  }
}

</mosaic_0001>

<llo_original>
// kernel: conv1d_forward.1
$region0: #{conv1d_forward.1}
  #allocation0 [shape = 'u32[]', space=smem, size = 0x4, offset = 0x4, fixed_abs, tag = 'smem constant byte address 0x4 - core index']
  #allocation1 [shape = 'u32[72,128]{1,0:T(1,128)}', space=vmem, size = 0x9000, scoped, tag = 'internal scratch']
  %s0 = inlined_call_operand.vmem [shape: f32[2,1,1,4,18], index: 0, kind: input, shape index: {}]
  %s1 = inlined_call_operand.vmem [shape: f32[1,3,8,4], index: 1, kind: input, shape index: {}]
  %s2 = inlined_call_operand.vmem [shape: f32[1,8,1], index: 2, kind: input, shape index: {}]
  %s3 = inlined_call_operand.hbm [shape: f32[2,1,8,16], index: 3, kind: output, shape index: {}]
  %s4 = sld [smem:[#allocation0]]
  $region45: #{conv1d_forward.1} parent=0
    _
  %s6 = ssub.s32 1, %s4
  %s7 = scalar_select 0, %s6, %s4
  $region1: #{conv1d_forward.1} parent=0
    #allocation2 [shape = 'u8[8192]{0}', space=vmem, size = 0x2000, scoped, tag = 'output window, operand 0']
    #allocation3 [shape = 's32[2]{0}', space=sflag, size = 0x8, scoped, tag = 'scoped memory for conv1d_forward.1']
    %8 = vsyncpa [#allocation3], 0
    %s9 = scalar_lea.sflag [#allocation3], 1
    %10 = vsyncpa %s9, 0
    loop: start=0, step=1, limit=4
    $region2: #{conv1d_forward.1} parent=1 // loop_pre_header
      _
    $region3: #{conv1d_forward.1} parent=1 // loop_header
      %s12 = sphi 0, %s16
      %p13 = scmp.ge.s32.totalorder %s12, 4
      %s19 = sphi 0, %s38
      %s20 = sphi 0, %s34
      %s21 = sphi 0, %s30
      %s22 = sphi 0, %s19
      %s23 = sphi 0, %s20
      %s24 = sphi 0, %s21
      %s25 = sphi 0, %s22
      %s26 = sphi 0, %s23
      %s27 = sphi 0, %s24
      %s43 = sphi 0, %s45
      %s46 = sphi 0, %s43
      %s47 = sphi 0, %s46
      %s63 = sphi 0, %s47
      %s69 = sphi 0, %s71
      %s72 = sphi 0, %s69
      %s73 = sphi 0, %s72
      %s89 = sphi 0, %s73
      %s95 = sphi 0, %s97
      %s98 = sphi 0, %s95
      %s99 = sphi 0, %s98
      %s115 = sphi 0, %s99
      %s125 = sphi 0, %s127
      %s128 = sphi 0, %s125
      %s129 = sphi 0, %s128
      %s145 = sphi 0, %s129
    $region4: #{conv1d_forward.1} parent=1 // loop_header_branch
      %15 = sbr.rel (%p13) target = $region8
    $region5: #{conv1d_forward.1} parent=1 // loop_body
      %s17 = ssub.s32 %s12, 1
      %s18 = ssub.s32 %s12, 2
      %s28 = sadd.s32 1, %s21
      %p29 = scmp.ge.s32.totalorder %s28, 1
      %s30 = scalar_select %p29, 0, %s28
      %s31 = sadd.s32 1, %s20
      %s32 = scalar_select %p29, %s31, %s20
      %p33 = scmp.ge.s32.totalorder %s32, 2
      %s34 = scalar_select %p33, 0, %s32
      %s35 = sadd.s32 1, %s19
      %s36 = scalar_select %p33, %s35, %s19
      %p37 = scmp.ge.s32.totalorder %s36, 1
      %s38 = scalar_select %p37, 0, %s36
      %s39 = ssub.s32 %s20, %s34
      %s40 = ssub.s32 %s19, %s38
      %s41 = sor.u32 %s39, %s40
      %p42 = scmp.eq.s32.totalorder %s41, 0
      %s44 = sadd.s32 %s43, 1
      %s45 = scalar_select %p42, %s43, %s44
      %p48 = pneg %p42
      %p49 = scmp.eq.s32.totalorder %s12, 1
      %p50 = por %p48, %p49
      %p51 = scmp.ne.s32.totalorder %s43, %s46
      %p52 = scmp.eq.s32.totalorder %s12, 0
      %p53 = por %p51, %p52
      %p54 = scmp.ne.s32.totalorder %s43, %s46
      %p55 = scmp.eq.s32.totalorder %s17, 1
      %p56 = por %p54, %p55
      %p57 = scmp.ne.s32.totalorder %s46, %s47
      %p58 = scmp.eq.s32.totalorder %s17, 0
      %p59 = por %p57, %p58
      %p60 = scmp.ne.s32.totalorder %s46, %s47
      %p61 = scmp.eq.s32.totalorder %s18, 1
      %p62 = por %p60, %p61
      %p64 = scmp.ne.s32.totalorder %s47, %s63
      %p65 = scmp.eq.s32.totalorder %s18, 0
      %p66 = por %p64, %p65
      %s67 = ssub.s32 %s19, %s38
      %p68 = scmp.eq.s32.totalorder %s67, 0
      %s70 = sadd.s32 %s69, 1
      %s71 = scalar_select %p68, %s69, %s70
      %p74 = pneg %p68
      %p75 = scmp.eq.s32.totalorder %s12, 1
      %p76 = por %p74, %p75
      %p77 = scmp.ne.s32.totalorder %s69, %s72
      %p78 = scmp.eq.s32.totalorder %s12, 0
      %p79 = por %p77, %p78
      %p80 = scmp.ne.s32.totalorder %s69, %s72
      %p81 = scmp.eq.s32.totalorder %s17, 1
      %p82 = por %p80, %p81
      %p83 = scmp.ne.s32.totalorder %s72, %s73
      %p84 = scmp.eq.s32.totalorder %s17, 0
      %p85 = por %p83, %p84
      %p86 = scmp.ne.s32.totalorder %s72, %s73
      %p87 = scmp.eq.s32.totalorder %s18, 1
      %p88 = por %p86, %p87
      %p90 = scmp.ne.s32.totalorder %s73, %s89
      %p91 = scmp.eq.s32.totalorder %s18, 0
      %p92 = por %p90, %p91
      %s93 = ssub.s32 %s19, %s38
      %p94 = scmp.eq.s32.totalorder %s93, 0
      %s96 = sadd.s32 %s95, 1
      %s97 = scalar_select %p94, %s95, %s96
      %p100 = pneg %p94
      %p101 = scmp.eq.s32.totalorder %s12, 1
      %p102 = por %p100, %p101
      %p103 = scmp.ne.s32.totalorder %s95, %s98
      %p104 = scmp.eq.s32.totalorder %s12, 0
      %p105 = por %p103, %p104
      %p106 = scmp.ne.s32.totalorder %s95, %s98
      %p107 = scmp.eq.s32.totalorder %s17, 1
      %p108 = por %p106, %p107
      %p109 = scmp.ne.s32.totalorder %s98, %s99
      %p110 = scmp.eq.s32.totalorder %s17, 0
      %p111 = por %p109, %p110
      %p112 = scmp.ne.s32.totalorder %s98, %s99
      %p113 = scmp.eq.s32.totalorder %s18, 1
      %p114 = por %p112, %p113
      %p116 = scmp.ne.s32.totalorder %s99, %s115
      %p117 = scmp.eq.s32.totalorder %s18, 0
      %p118 = por %p116, %p117
      %s119 = ssub.s32 %s20, %s34
      %s120 = ssub.s32 %s19, %s38
      %s121 = sor.u32 %s119, %s120
      %s122 = ssub.s32 %s21, %s30
      %s123 = sor.u32 %s121, %s122
      %p124 = scmp.eq.s32.totalorder %s123, 0
      %s126 = sadd.s32 %s125, 1
      %s127 = scalar_select %p124, %s125, %s126
      %p130 = pneg %p124
      %p131 = scmp.eq.s32.totalorder %s12, 1
      %p132 = por %p130, %p131
      %p133 = scmp.ne.s32.totalorder %s125, %s128
      %p134 = scmp.eq.s32.totalorder %s12, 0
      %p135 = por %p133, %p134
      %p136 = scmp.ne.s32.totalorder %s125, %s128
      %p137 = scmp.eq.s32.totalorder %s17, 1
      %p138 = por %p136, %p137
      %p139 = scmp.ne.s32.totalorder %s128, %s129
      %p140 = scmp.eq.s32.totalorder %s17, 0
      %p141 = por %p139, %p140
      %p142 = scmp.ne.s32.totalorder %s128, %s129
      %p143 = scmp.eq.s32.totalorder %s18, 1
      %p144 = por %p142, %p143
      %p146 = scmp.ne.s32.totalorder %s129, %s145
      %p147 = scmp.eq.s32.totalorder %s18, 0
      %p148 = por %p146, %p147
      %p149 = scmp.le.s32.totalorder 1, %s12
      %p150 = scmp.lt.s32.totalorder %s12, 3
      %p151 = pnand %p149, %p150
      %p152 = pneg %p151
      // Predicated region
      $region9: #{conv1d_forward.1} parent=5 // pred_check
        _
      $region10: #{conv1d_forward.1} parent=5 // pred_check_branch
        %154 = sbr.rel (%p151) target = $region12
      $region11: #{conv1d_forward.1} parent=5 // pred_region
        %s155 = ssub.s32 %s12, 1
        // Predicated region
        $region13: #{conv1d_forward.1} parent=11 // pred_check
          %p156 = pneg %p85
        $region14: #{conv1d_forward.1} parent=11 // pred_check_branch
          %158 = sbr.rel (%p156) target = $region16
        $region15: #{conv1d_forward.1} parent=11 // pred_region
          %p159 = scmp.lt.s32.totalorder %s22, 0
          %s160 = scalar_select %p159, %s22, 0
          %s161 = smul.addr %s160, 3
          %s162 = smul.addr %s161, 8
          %s163 = scalar_lea.vmem %s1, %s162
        $region16: #{conv1d_forward.1} parent=11 // pred_fallthru
          _
        // Predicated region
        $region17: #{conv1d_forward.1} parent=11 // pred_check
          %p164 = pneg %p111
        $region18: #{conv1d_forward.1} parent=11 // pred_check_branch
          %166 = sbr.rel (%p164) target = $region20
        $region19: #{conv1d_forward.1} parent=11 // pred_region
          %p167 = scmp.lt.s32.totalorder %s22, 0
          %s168 = scalar_select %p167, %s22, 0
          %s169 = smul.addr %s168, 8
          %s170 = scalar_lea.vmem %s2, %s169
        $region20: #{conv1d_forward.1} parent=11 // pred_fallthru
          _
      $region12: #{conv1d_forward.1} parent=5 // pred_fallthru
        _
      %p171 = scmp.lt.s32.totalorder %s12, 2
      // Predicated region
      $region21: #{conv1d_forward.1} parent=5 // pred_check
        %p172 = pneg %p171
      $region22: #{conv1d_forward.1} parent=5 // pred_check_branch
        %174 = sbr.rel (%p172) target = $region24
      $region23: #{conv1d_forward.1} parent=5 // pred_region
        // Predicated region
        $region25: #{conv1d_forward.1} parent=23 // pred_check
          %p175 = pneg %p53
        $region26: #{conv1d_forward.1} parent=23 // pred_check_branch
          %177 = sbr.rel (%p175) target = $region28
        $region27: #{conv1d_forward.1} parent=23 // pred_region
          %p178 = scmp.lt.s32.totalorder %s20, 1
          %s179 = scalar_select %p178, %s20, 1
          %p180 = scmp.lt.s32.totalorder %s19, 0
          %s181 = scalar_select %p180, %s19, 0
          %s182 = sadd.s32 %s181, %s179
          %s183 = smul.addr %s182, 4
          %s184 = scalar_lea.vmem %s0, %s183
        $region28: #{conv1d_forward.1} parent=23 // pred_fallthru
          _
      $region24: #{conv1d_forward.1} parent=5 // pred_fallthru
        _
      %p185 = scmp.le.s32.totalorder 1, %s12
      %p186 = scmp.lt.s32.totalorder %s12, 3
      %p187 = pnand %p185, %p186
      %p188 = pneg %p187
      // Predicated region
      $region29: #{conv1d_forward.1} parent=5 // pred_check
        _
      $region30: #{conv1d_forward.1} parent=5 // pred_check_branch
        %190 = sbr.rel (%p187) target = $region32
      $region31: #{conv1d_forward.1} parent=5 // pred_region
        %s191 = ssub.s32 %s12, 1
        %p192 = scmp.lt.s32.totalorder %s23, 1
        %s193 = scalar_select %p192, %s23, 1
        %p194 = scmp.lt.s32.totalorder %s22, 0
        %s195 = scalar_select %p194, %s22, 0
        %s196 = sadd.s32 %s195, %s193
        %s197 = smul.addr %s196, 4
        %s198 = scalar_lea.vmem %s0, %s197
        %p199 = pneg %p59
        %p200 = pneg %p56
        %p201 = scmp.lt.s32.totalorder %s22, 0
        %s202 = scalar_select %p201, %s22, 0
        %s203 = smul.addr %s202, 3
        %s204 = smul.addr %s203, 8
        %s205 = scalar_lea.vmem %s1, %s204
        %p206 = pneg %p85
        %p207 = pneg %p82
        %p208 = scmp.lt.s32.totalorder %s22, 0
        %s209 = scalar_select %p208, %s22, 0
        %s210 = smul.addr %s209, 8
        %s211 = scalar_lea.vmem %s2, %s210
        %p212 = pneg %p111
        %p213 = pneg %p108
        %p214 = pneg %p141
        %p215 = pneg %p138
        %s216 = sand.u32 %s128, 1
        %s217 = scalar_lea.sflag [#allocation3], %s216
        %s218 = sand.u32 %s128, 1
        %s219 = smul.addr %s218, 8
        %s220 = scalar_lea.vmem [#allocation2], %s219
        %p221 = scmp.lt.s32.totalorder %s23, 1
        %s222 = scalar_select %p221, %s23, 1
        %p223 = scmp.lt.s32.totalorder %s22, 0
        %s224 = scalar_select %p223, %s22, 0
        %s225 = sadd.s32 %s224, %s222
        %s226 = smul.addr %s225, 4
        %s227 = scalar_lea.vmem %s0, %s226
        %p228 = scmp.lt.s32.totalorder %s22, 0
        %s229 = scalar_select %p228, %s22, 0
        %s230 = smul.addr %s229, 3
        %s231 = smul.addr %s230, 8
        %s232 = scalar_lea.vmem %s1, %s231
        %p233 = scmp.lt.s32.totalorder %s22, 0
        %s234 = scalar_select %p233, %s22, 0
        %s235 = smul.addr %s234, 8
        %s236 = scalar_lea.vmem %s2, %s235
        %v237 = vld [vmem:[%s227] sm:$0xf]
        %v238 = vld [vmem:[%s232] sm:$0xff]
        %s239 = scalar_lea.vmem %s232, 8
        %v240 = vld [vmem:[%s239] sm:$0xff]
        %242 = vrot.lane.b32.xlu0 %v237, 127
        %v243 = vpop.permute.xlu0 %242
        %vm244 = vcmask 31744
        %v246 = vsel %vm244, %v240, 0
        %vm248 = vcmask 1043456
        %v249 = vsel %vm248, %v243, 0
        %251 = vmatpush.msra.mxu0 0.0
        %252 = vmatpush.msra.mxu0 0.0
        %253 = vmatpush.msra.mxu0 0.0
        %254 = vmatpush.msra.mxu0 0.0
        %255 = vmatpush.msra.mxu0 0.0
        %256 = vmatpush.msra.mxu0 0.0
        %257 = vmatpush.msra.mxu0 0.0
        %258 = vmatpush.msra.mxu0 0.0
        %259 = vmatpush.msra.mxu0 0.0
        %260 = vmatpush.msra.mxu0 0.0
        %261 = vmatpush.msra.mxu0 0.0
        %262 = vmatpush.msra.mxu0 0.0
        %263 = vmatpush.msra.mxu0 0.0
        %264 = vmatpush.msra.mxu0 0.0
        %265 = vmatpush.msra.mxu0 0.0
        %266 = vmatpush.msra.mxu0 %v249
        %267 = vmatmul.f32.gmra.mxu0 %v246
        %v268 = vpop.f32.mrf.mxu0
        %v269 = vadd.f32 0.0, %v268
        %270 = vdwg.mxu0
        %v272 = vsel %vm244, %v238, 0
        %v274 = vsel %vm248, %v237, 0
        %276 = vmatpush.msra.mxu0 0.0
        %277 = vmatpush.msra.mxu0 0.0
        %278 = vmatpush.msra.mxu0 0.0
        %279 = vmatpush.msra.mxu0 0.0
        %280 = vmatpush.msra.mxu0 0.0
        %281 = vmatpush.msra.mxu0 0.0
        %282 = vmatpush.msra.mxu0 0.0
        %283 = vmatpush.msra.mxu0 0.0
        %284 = vmatpush.msra.mxu0 0.0
        %285 = vmatpush.msra.mxu0 0.0
        %286 = vmatpush.msra.mxu0 0.0
        %287 = vmatpush.msra.mxu0 0.0
        %288 = vmatpush.msra.mxu0 0.0
        %289 = vmatpush.msra.mxu0 0.0
        %290 = vmatpush.msra.mxu0 0.0
        %291 = vmatpush.msra.mxu0 %v274
        %292 = vmatmul.f32.gmra.mxu0 %v272
        %v293 = vpop.f32.mrf.mxu0
        %v294 = vadd.f32 %v269, %v293
        %295 = vdwg.mxu0
        %s296 = scalar_lea.vmem %s232, 16
        %v297 = vld [vmem:[%s296] sm:$0xff]
        %298 = vrot.lane.b32.xlu0 %v237, 126
        %v299 = vpop.permute.xlu0 %298
        %v301 = vsel %vm244, %v297, 0
        %v303 = vsel %vm248, %v299, 0
        %305 = vmatpush.msra.mxu0 0.0
        %306 = vmatpush.msra.mxu0 0.0
        %307 = vmatpush.msra.mxu0 0.0
        %308 = vmatpush.msra.mxu0 0.0
        %309 = vmatpush.msra.mxu0 0.0
        %310 = vmatpush.msra.mxu0 0.0
        %311 = vmatpush.msra.mxu0 0.0
        %312 = vmatpush.msra.mxu0 0.0
        %313 = vmatpush.msra.mxu0 0.0
        %314 = vmatpush.msra.mxu0 0.0
        %315 = vmatpush.msra.mxu0 0.0
        %316 = vmatpush.msra.mxu0 0.0
        %317 = vmatpush.msra.mxu0 0.0
        %318 = vmatpush.msra.mxu0 0.0
        %319 = vmatpush.msra.mxu0 0.0
        %320 = vmatpush.msra.mxu0 %v303
        %321 = vmatmul.f32.gmra.mxu0 %v301
        %v322 = vpop.f32.mrf.mxu0
        %v323 = vadd.f32 0.0, %v322
        %324 = vdwg.mxu0
        %v325 = vadd.f32 %v294, %v323
        %v326 = vld [vmem:[%s236] sm:$0xff]
        %328 = vset.pattern.permute.xlu0 0
        %329 = vperm.xlu0 %328, %v326
        %v330 = vpop.permute.xlu0 %329
        %v332 = vadd.f32 %v325, %v330
        %vm333 = vcmask 130048
        %334 = vst.msk [vmem:[%s220] sm:$0xff] %vm333, %v332
        %s335 = sand.u32 %s128, 1
        %s336 = scalar_lea.sflag [#allocation3], %s335
        %s337 = sand.u32 %s128, 1
        %s338 = smul.addr %s337, 8
        %s339 = scalar_lea.vmem [#allocation2], %s338
        // Predicated region
        $region33: #{conv1d_forward.1} parent=31 // pred_check
          %p340 = pneg %p138
        $region34: #{conv1d_forward.1} parent=31 // pred_check_branch
          %342 = sbr.rel (%p340) target = $region36
        $region35: #{conv1d_forward.1} parent=31 // pred_region
          %344 = vsyncadd %s336, 0
          %s345 = sadd.s32 %s24, %s22
          %s346 = sadd.s32 %s345, %s23
          %s347 = smul.addr %s346, 8
          %s348 = scalar_lea.hbm %s3, %s347
          %s350 = sshll.u32 %s339, 4
          %s351 = int_to_ptr.vmem [resolvable:$true] %s350
          %s352 = sshll.u32 %s348, 4
          %s353 = int_to_ptr.hbm [resolvable:$true] %s352
          %355 = dma.vmem_to_hbm [thread:$0]  %s351, 128, %s353, %s336
        $region36: #{conv1d_forward.1} parent=31 // pred_fallthru
          _
      $region32: #{conv1d_forward.1} parent=5 // pred_fallthru
        _
      %p356 = scmp.le.s32.totalorder 2, %s12
      // Predicated region
      $region37: #{conv1d_forward.1} parent=5 // pred_check
        %p357 = pneg %p356
      $region38: #{conv1d_forward.1} parent=5 // pred_check_branch
        %359 = sbr.rel (%p357) target = $region40
      $region39: #{conv1d_forward.1} parent=5 // pred_region
        %s360 = ssub.s32 %s12, 2
        // Predicated region
        $region41: #{conv1d_forward.1} parent=39 // pred_check
          %p361 = pneg %p144
        $region42: #{conv1d_forward.1} parent=39 // pred_check_branch
          %363 = sbr.rel (%p361) target = $region44
        $region43: #{conv1d_forward.1} parent=39 // pred_region
          %s364 = sand.u32 %s129, 1
          %s365 = scalar_lea.sflag [#allocation3], %s364
          %s366 = sand.u32 %s129, 1
          %s367 = smul.addr %s366, 8
          %s368 = scalar_lea.vmem [#allocation2], %s367
          %370 = dma.done %s365, 128
        $region44: #{conv1d_forward.1} parent=39 // pred_fallthru
          _
      $region40: #{conv1d_forward.1} parent=5 // pred_fallthru
        _
    $region6: #{conv1d_forward.1} parent=1 // loop_footer
      %s16 = sadd.s32 1, %s12
    $region7: #{conv1d_forward.1} parent=1 // loop_footer_branch
      %11 = sbr.rel target = $region3
    $region8: #{conv1d_forward.1} parent=1 // loop_exit
      _
    %371 = vsyncpa [#allocation3], 1
    %s372 = scalar_lea.sflag [#allocation3], 1
    %373 = vsyncpa %s372, 1

</llo_original>
